<compile_context>
chip_gen: v7x
topology: tpu7x:2x2x1
jax: 0.10.0
libtpu: 0.0.40
codegen_flags: <defaults>
</compile_context>

<pallas_src>
import functools

import numpy as np
import jax
import jax.numpy as jnp
from jax.experimental import pallas as pl
from jax.experimental.pallas import tpu as pltpu

LANE = 128
SUB = 16   # sublane alignment that satisfies both f32 (8) and bf16 (16) tiling


def _round_up(x, m):
    return (x + m - 1) // m * m


def _mlp_fused_kernel(*refs, n_hidden, compute_dtype):
    # refs = (x, W0, b0, [Wh_stack, bh_stack], Wf_pad, bf, out)
    x_ref = refs[0]
    o_ref = refs[-1]
    w0_ref, b0_ref = refs[1], refs[2]
    if n_hidden > 0:
        wh_ref, bh_ref = refs[3], refs[4]
        wf_ref, bf_ref = refs[5], refs[6]
    else:
        wf_ref, bf_ref = refs[3], refs[4]

    def dense_relu(a, w, b):
        # MXU matmul (bf16/f32 inputs) with f32 accumulation; bias+ReLU epilogue
        # stays in f32 (v5e has no bf16 VPU), then cast back to compute_dtype so
        # the live intermediate stays narrow for the next MXU pass.
        y = jnp.dot(a, w, preferred_element_type=jnp.float32)
        return jnp.maximum(y + b, 0.0).astype(compute_dtype)

    h = dense_relu(x_ref[...], w0_ref[...], b0_ref[...])
    for l in range(n_hidden):
        h = dense_relu(h, wh_ref[l], bh_ref[l])

    # Final fc on the MXU: wf zero-padded to (Hp, 128) with the real vector in
    # column 0.  Store the full lane-dense (TM, 128) slab (unmasked vst); the
    # wrapper slices column 0.
    y = jnp.dot(h, wf_ref[...], preferred_element_type=jnp.float32) + bf_ref[...]
    o_ref[...] = y.astype(o_ref.dtype)


def prepare_mlp_params(params, compute_dtype=jnp.bfloat16):
    """One-time zero-padding + casting of the MLP params (call outside the hot loop).

    `params` is a list [(W, b), ...] with W shaped (in_features, out_features),
    i.e. the nn.Linear weight already transposed so y = x @ W + b.
    Returns a pytree of lane-padded, compute_dtype weights (biases stay f32).
    """
    w0, b0 = params[0]
    K0, H = w0.shape
    Kp, Hp = _round_up(K0, LANE), _round_up(H, LANE)

    def pad_w(w, ip, op):
        return jnp.zeros((ip, op), compute_dtype).at[
            :w.shape[0], :w.shape[1]].set(jnp.asarray(w, compute_dtype))

    def pad_b(b, op):
        return jnp.zeros((1, op), jnp.float32).at[0, :b.shape[0]].set(
            jnp.asarray(b, jnp.float32))

    prepared = {"w0": pad_w(w0, Kp, Hp), "b0": pad_b(b0, Hp)}

    hidden = params[1:-1]
    if hidden:
        prepared["wh"] = jnp.stack([pad_w(w, Hp, Hp) for (w, _) in hidden])
        prepared["bh"] = jnp.stack([pad_b(b, Hp) for (_, b) in hidden])
    else:
        prepared["wh"] = None
        prepared["bh"] = None

    wf, bf = params[-1]                       # (H, 1), (1,)
    prepared["wf"] = jnp.zeros((Hp, LANE), compute_dtype).at[:H, 0].set(
        jnp.asarray(wf[:, 0], compute_dtype))
    prepared["bf"] = jnp.broadcast_to(
        jnp.asarray(bf, jnp.float32).reshape(1, 1), (1, LANE))
    return prepared


@functools.partial(jax.jit, static_argnames=("tile_m",))
def mlp_forward(prepared, x, *, tile_m=512):
    """Fused forward pass: ReLU(x@W0+b0) -> [ReLU(@Wi+bi)]* -> @Wf+bf."""
    M, K0 = x.shape
    Kp, Hp = prepared["w0"].shape
    compute_dtype = prepared["w0"].dtype
    n_hidden = 0 if prepared["wh"] is None else prepared["wh"].shape[0]
    itemsize = np.dtype(compute_dtype).itemsize

    # Batch tile: sublane-aligned; give v7x's second TensorCore work (>=2 grid
    # steps) whenever the batch permits.
    TM = min(tile_m, _round_up(M, SUB))
    if _round_up(M, TM) // TM < 2 and M > SUB:
        TM = _round_up((M + 1) // 2, SUB)
    Mp = _round_up(M, TM)
    grid = (Mp // TM,)

    # Per-call input padding only (weights were padded once in prepare_mlp_params).
    xp = jnp.zeros((Mp, Kp), compute_dtype).at[:M, :K0].set(
        x.astype(compute_dtype))

    ins = [xp, prepared["w0"], prepared["b0"]]
    in_specs = [
        pl.BlockSpec((TM, Kp), lambda i: (i, 0)),
        pl.BlockSpec((Kp, Hp), lambda i: (0, 0)),
        pl.BlockSpec((1, Hp), lambda i: (0, 0)),
    ]
    if n_hidden > 0:
        ins += [prepared["wh"], prepared["bh"]]
        in_specs += [
            pl.BlockSpec((n_hidden, Hp, Hp), lambda i: (0, 0, 0)),
            pl.BlockSpec((n_hidden, 1, Hp), lambda i: (0, 0, 0)),
        ]
    ins += [prepared["wf"], prepared["bf"]]
    in_specs += [
        pl.BlockSpec((Hp, LANE), lambda i: (0, 0)),
        pl.BlockSpec((1, LANE), lambda i: (0, 0)),
    ]

    w_elems = Kp * Hp + n_hidden * Hp * Hp + Hp * LANE
    flops = 2 * Mp * (Kp * Hp + n_hidden * Hp * Hp + Hp * LANE)
    bytes_accessed = (
        Mp * Kp * itemsize                      # x in
        + w_elems * itemsize                    # weights
        + (2 + n_hidden) * Hp * 4               # biases
        + Mp * LANE * 4                         # lane-dense out slab
    )

    # VMEM budget: resident weights (x2 pipeline buffers), double-buffered x/out
    # tiles, plus scratch for the (TM, Hp) layer intermediates.
    w_bytes = w_elems * itemsize + (2 + n_hidden) * Hp * 4
    act_bytes = 2 * TM * Kp * itemsize + 2 * TM * LANE * 4 + 4 * TM * Hp * 4
    vmem_limit = int(min(64 << 20,
                         max(32 << 20, 2 * w_bytes + act_bytes + (4 << 20))))

    out = pl.pallas_call(
        functools.partial(_mlp_fused_kernel, n_hidden=n_hidden,
                          compute_dtype=compute_dtype),
        out_shape=jax.ShapeDtypeStruct((Mp, LANE), jnp.float32),
        grid=grid,
        in_specs=in_specs,
        out_specs=pl.BlockSpec((TM, LANE), lambda i: (i, 0)),
        compiler_params=pltpu.CompilerParams(
            dimension_semantics=("parallel",),
            vmem_limit_bytes=vmem_limit),
        cost_estimate=pl.CostEstimate(
            flops=flops, transcendentals=0, bytes_accessed=bytes_accessed),
    )(*ins)
    return out[:M, 0:1]


def init_mlp_params(key, input_size, hidden_size, n_layers):
    """Deterministic init mimicking nn.Linear's U(-1/sqrt(fan_in), 1/sqrt(fan_in)).

    Weights stored as (in_features, out_features) so y = x @ W + b matches
    F.linear(x, W_pt, b) semantics.
    """
    params = []
    dims = [(input_size, hidden_size)]                       # self.mlp
    dims += [(hidden_size, hidden_size)] * (n_layers - 1)    # hidden_layers
    dims += [(hidden_size, 1)]                               # self.fc
    for (fan_in, fan_out) in dims:
        key, kw, kb = jax.random.split(key, 3)
        bound = 1.0 / (fan_in ** 0.5)
        w = jax.random.uniform(kw, (fan_in, fan_out), jnp.float32, -bound, bound)
        b = jax.random.uniform(kb, (fan_out,), jnp.float32, -bound, bound)
        params.append((w, b))
    return params


if __name__ == "__main__":
    input_size = 32
    hidden_size = 32
    n_layers = 3
    batch = 8

    key = jax.random.PRNGKey(0)
    key, kx = jax.random.split(key)
    x = jax.random.normal(kx, (batch, input_size), jnp.float32)
    params = init_mlp_params(key, input_size, hidden_size, n_layers)

    # Plain-JAX f32 reference of the same forward pass.
    ref = jnp.maximum(x @ params[0][0] + params[0][1], 0.0)
    for (w, b) in params[1:-1]:
        ref = jnp.maximum(ref @ w + b, 0.0)
    ref = ref @ params[-1][0] + params[-1][1]

    # bf16-MXU path (default): weights padded/cast ONCE, reused every call.
    prepared_bf16 = prepare_mlp_params(params, compute_dtype=jnp.bfloat16)
    out_bf16 = jax.block_until_ready(mlp_forward(prepared_bf16, x))
    assert out_bf16.shape == (batch, 1), out_bf16.shape
    assert jnp.allclose(out_bf16, ref, atol=1e-1, rtol=1e-1), \
        float(jnp.max(jnp.abs(out_bf16 - ref)))

    # f32-input path (MXU default precision) — tighter tolerance.
    prepared_f32 = prepare_mlp_params(params, compute_dtype=jnp.float32)
    out_f32 = jax.block_until_ready(mlp_forward(prepared_f32, x))
    assert out_f32.shape == (batch, 1), out_f32.shape
    assert jnp.allclose(out_f32, ref, atol=2e-2, rtol=2e-2), \
        float(jnp.max(jnp.abs(out_f32 - ref)))

    print("KERNEL_OK")
</pallas_src>

<mosaic_0001>
module attributes {stable_mosaic.version = 11 : i64} {
  func.func @_mlp_fused_kernel(%arg0: i32, %arg1: memref<16x128xbf16, #tpu.memory_space<vmem>>, %arg2: memref<128x128xbf16, #tpu.memory_space<vmem>>, %arg3: memref<1x128xf32, #tpu.memory_space<vmem>>, %arg4: memref<2x128x128xbf16, #tpu.memory_space<vmem>>, %arg5: memref<2x1x128xf32, #tpu.memory_space<vmem>>, %arg6: memref<128x128xbf16, #tpu.memory_space<vmem>>, %arg7: memref<1x128xf32, #tpu.memory_space<vmem>>, %arg8: memref<16x128xf32, #tpu.memory_space<vmem>>) attributes {dimension_semantics = [#tpu.dimension_semantics<parallel>], iteration_bounds = array<i64: 1>, scalar_prefetch = 0 : i64, scratch_operands = 0 : i64, tpu.core_type = #tpu.core_type<tc>, window_params = [{transform_indices = @transform_0, window_bounds = array<i64: 16, 128>}, {pipeline_mode = #tpu.pipeline_mode<synchronous>, transform_indices = @transform_1, window_bounds = array<i64: 128, 128>}, {pipeline_mode = #tpu.pipeline_mode<synchronous>, transform_indices = @transform_2, window_bounds = array<i64: 1, 128>}, {pipeline_mode = #tpu.pipeline_mode<synchronous>, transform_indices = @transform_3, window_bounds = array<i64: 2, 128, 128>}, {pipeline_mode = #tpu.pipeline_mode<synchronous>, transform_indices = @transform_4, window_bounds = array<i64: 2, 1, 128>}, {pipeline_mode = #tpu.pipeline_mode<synchronous>, transform_indices = @transform_5, window_bounds = array<i64: 128, 128>}, {pipeline_mode = #tpu.pipeline_mode<synchronous>, transform_indices = @transform_6, window_bounds = array<i64: 1, 128>}, {transform_indices = @transform_7, window_bounds = array<i64: 16, 128>}]} {
    %c0 = arith.constant 0 : index
    %c0_0 = arith.constant 0 : index
    %0 = vector.load %arg1[%c0, %c0_0] : memref<16x128xbf16, #tpu.memory_space<vmem>>, vector<16x128xbf16>
    %c0_1 = arith.constant 0 : index
    %c0_2 = arith.constant 0 : index
    %1 = vector.load %arg2[%c0_1, %c0_2] : memref<128x128xbf16, #tpu.memory_space<vmem>>, vector<128x128xbf16>
    %c0_3 = arith.constant 0 : index
    %c0_4 = arith.constant 0 : index
    %2 = vector.load %arg3[%c0_3, %c0_4] : memref<1x128xf32, #tpu.memory_space<vmem>>, vector<1x128xf32>
    %cst = arith.constant dense<0.000000e+00> : vector<16x128xf32>
    %3 = tpu.matmul %0, %1, %cst {dimension_numbers = #tpu.dot_dimension_numbers<[1], [0], [0], [1], [0, 0, 1, 1], [], []>} : vector<16x128xbf16>, vector<128x128xbf16>, vector<16x128xf32> -> vector<16x128xf32>
    %4 = vector.broadcast %2 : vector<1x128xf32> to vector<16x128xf32>
    %5 = arith.addf %3, %4 : vector<16x128xf32>
    %cst_5 = arith.constant 0.000000e+00 : f32
    %6 = vector.broadcast %cst_5 : f32 to vector<16x128xf32>
    %7 = arith.maximumf %5, %6 : vector<16x128xf32>
    %8 = arith.truncf %7 : vector<16x128xf32> to vector<16x128xbf16>
    %c0_6 = arith.constant 0 : index
    %c0_7 = arith.constant 0 : index
    %c0_8 = arith.constant 0 : index
    %9 = vector.load %arg4[%c0_6, %c0_7, %c0_8] : memref<2x128x128xbf16, #tpu.memory_space<vmem>>, vector<1x128x128xbf16>
    %10 = vector.shape_cast %9 : vector<1x128x128xbf16> to vector<128x128xbf16>
    %c0_9 = arith.constant 0 : index
    %c0_10 = arith.constant 0 : index
    %c0_11 = arith.constant 0 : index
    %11 = vector.load %arg5[%c0_9, %c0_10, %c0_11] : memref<2x1x128xf32, #tpu.memory_space<vmem>>, vector<1x1x128xf32>
    %12 = vector.shape_cast %11 : vector<1x1x128xf32> to vector<1x128xf32>
    %cst_12 = arith.constant dense<0.000000e+00> : vector<16x128xf32>
    %13 = tpu.matmul %8, %10, %cst_12 {dimension_numbers = #tpu.dot_dimension_numbers<[1], [0], [0], [1], [0, 0, 1, 1], [], []>} : vector<16x128xbf16>, vector<128x128xbf16>, vector<16x128xf32> -> vector<16x128xf32>
    %14 = vector.broadcast %12 : vector<1x128xf32> to vector<16x128xf32>
    %15 = arith.addf %13, %14 : vector<16x128xf32>
    %cst_13 = arith.constant 0.000000e+00 : f32
    %16 = vector.broadcast %cst_13 : f32 to vector<16x128xf32>
    %17 = arith.maximumf %15, %16 : vector<16x128xf32>
    %18 = arith.truncf %17 : vector<16x128xf32> to vector<16x128xbf16>
    %c1 = arith.constant 1 : index
    %c0_14 = arith.constant 0 : index
    %c0_15 = arith.constant 0 : index
    %19 = vector.load %arg4[%c1, %c0_14, %c0_15] : memref<2x128x128xbf16, #tpu.memory_space<vmem>>, vector<1x128x128xbf16>
    %20 = vector.shape_cast %19 : vector<1x128x128xbf16> to vector<128x128xbf16>
    %c1_16 = arith.constant 1 : index
    %c0_17 = arith.constant 0 : index
    %c0_18 = arith.constant 0 : index
    %21 = vector.load %arg5[%c1_16, %c0_17, %c0_18] : memref<2x1x128xf32, #tpu.memory_space<vmem>>, vector<1x1x128xf32>
    %22 = vector.shape_cast %21 : vector<1x1x128xf32> to vector<1x128xf32>
    %cst_19 = arith.constant dense<0.000000e+00> : vector<16x128xf32>
    %23 = tpu.matmul %18, %20, %cst_19 {dimension_numbers = #tpu.dot_dimension_numbers<[1], [0], [0], [1], [0, 0, 1, 1], [], []>} : vector<16x128xbf16>, vector<128x128xbf16>, vector<16x128xf32> -> vector<16x128xf32>
    %24 = vector.broadcast %22 : vector<1x128xf32> to vector<16x128xf32>
    %25 = arith.addf %23, %24 : vector<16x128xf32>
    %cst_20 = arith.constant 0.000000e+00 : f32
    %26 = vector.broadcast %cst_20 : f32 to vector<16x128xf32>
    %27 = arith.maximumf %25, %26 : vector<16x128xf32>
    %28 = arith.truncf %27 : vector<16x128xf32> to vector<16x128xbf16>
    %c0_21 = arith.constant 0 : index
    %c0_22 = arith.constant 0 : index
    %29 = vector.load %arg6[%c0_21, %c0_22] : memref<128x128xbf16, #tpu.memory_space<vmem>>, vector<128x128xbf16>
    %cst_23 = arith.constant dense<0.000000e+00> : vector<16x128xf32>
    %30 = tpu.matmul %28, %29, %cst_23 {dimension_numbers = #tpu.dot_dimension_numbers<[1], [0], [0], [1], [0, 0, 1, 1], [], []>} : vector<16x128xbf16>, vector<128x128xbf16>, vector<16x128xf32> -> vector<16x128xf32>
    %c0_24 = arith.constant 0 : index
    %c0_25 = arith.constant 0 : index
    %31 = vector.load %arg7[%c0_24, %c0_25] : memref<1x128xf32, #tpu.memory_space<vmem>>, vector<1x128xf32>
    %32 = vector.broadcast %31 : vector<1x128xf32> to vector<16x128xf32>
    %33 = arith.addf %30, %32 : vector<16x128xf32>
    %c0_26 = arith.constant 0 : index
    %c0_27 = arith.constant 0 : index
    %34 = vector.load %arg8[%c0_26, %c0_27] : memref<16x128xf32, #tpu.memory_space<vmem>>, vector<16x128xf32>
    tpu.vector_store %arg8[%c0_26, %c0_27], %33 {strides = array<i32>} : memref<16x128xf32, #tpu.memory_space<vmem>>, vector<16x128xf32>,
    return
  }
  func.func @transform_0(%arg0: i32) -> (i32, i32) {
    %c0_i32 = arith.constant 0 : i32
    %c0_i32_0 = arith.constant 0 : i32
    return %arg0, %c0_i32 : i32, i32
  }
  func.func @transform_1(%arg0: i32) -> (i32, i32) {
    %c0_i32 = arith.constant 0 : i32
    %c0_i32_0 = arith.constant 0 : i32
    %c0_i32_1 = arith.constant 0 : i32
    return %c0_i32, %c0_i32_0 : i32, i32
  }
  func.func @transform_2(%arg0: i32) -> (i32, i32) {
    %c0_i32 = arith.constant 0 : i32
    %c0_i32_0 = arith.constant 0 : i32
    %c0_i32_1 = arith.constant 0 : i32
    return %c0_i32, %c0_i32_0 : i32, i32
  }
  func.func @transform_3(%arg0: i32) -> (i32, i32, i32) {
    %c0_i32 = arith.constant 0 : i32
    %c0_i32_0 = arith.constant 0 : i32
    %c0_i32_1 = arith.constant 0 : i32
    %c0_i32_2 = arith.constant 0 : i32
    return %c0_i32, %c0_i32_0, %c0_i32_1 : i32, i32, i32
  }
  func.func @transform_4(%arg0: i32) -> (i32, i32, i32) {
    %c0_i32 = arith.constant 0 : i32
    %c0_i32_0 = arith.constant 0 : i32
    %c0_i32_1 = arith.constant 0 : i32
    %c0_i32_2 = arith.constant 0 : i32
    return %c0_i32, %c0_i32_0, %c0_i32_1 : i32, i32, i32
  }
  func.func @transform_5(%arg0: i32) -> (i32, i32) {
    %c0_i32 = arith.constant 0 : i32
    %c0_i32_0 = arith.constant 0 : i32
    %c0_i32_1 = arith.constant 0 : i32
    return %c0_i32, %c0_i32_0 : i32, i32
  }
  func.func @transform_6(%arg0: i32) -> (i32, i32) {
    %c0_i32 = arith.constant 0 : i32
    %c0_i32_0 = arith.constant 0 : i32
    %c0_i32_1 = arith.constant 0 : i32
    return %c0_i32, %c0_i32_0 : i32, i32
  }
  func.func @transform_7(%arg0: i32) -> (i32, i32) {
    %c0_i32 = arith.constant 0 : i32
    %c0_i32_0 = arith.constant 0 : i32
    return %arg0, %c0_i32 : i32, i32
  }
}

</mosaic_0001>

<llo_original>
// kernel: mlp_forward.1
$region0: #{mlp_forward.1}
  #allocation0 [shape = 'u32[]', space=smem, size = 0x4, offset = 0x4, fixed_abs, tag = 'smem constant byte address 0x4 - core index']
  #allocation1 [shape = 'u32[144,128]{1,0:T(1,128)}', space=vmem, size = 0x12000, scoped, tag = 'internal scratch']
  %s0 = inlined_call_operand.vmem [shape: bf16[16,128], index: 0, kind: input, shape index: {}]
  %s1 = inlined_call_operand.hbm [shape: bf16[128,128], index: 1, kind: input, shape index: {}]
  %s2 = inlined_call_operand.vmem [shape: f32[1,128], index: 2, kind: input, shape index: {}]
  %s3 = inlined_call_operand.hbm [shape: bf16[2,128,128], index: 3, kind: input, shape index: {}]
  %s4 = inlined_call_operand.vmem [shape: f32[2,1,128], index: 4, kind: input, shape index: {}]
  %s5 = inlined_call_operand.hbm [shape: bf16[128,128], index: 5, kind: input, shape index: {}]
  %s6 = inlined_call_operand.vmem [shape: f32[1,128], index: 6, kind: input, shape index: {}]
  %s7 = inlined_call_operand.vmem [shape: f32[16,128], index: 7, kind: output, shape index: {}]
  %s8 = sld [smem:[#allocation0]]
  $region50: #{mlp_forward.1} parent=0
    _
  %s10 = ssub.s32 1, %s8
  %s11 = scalar_select 0, %s10, %s8
  $region1: #{mlp_forward.1} parent=0
    #allocation2 [shape = 'u8[32768]{0}', space=vmem, size = 0x8000, scoped, tag = 'input window, operand 1, single buffered']
    #allocation3 [shape = 's32[1]{0}', space=sflag, size = 0x4, scoped, tag = 'scoped memory for mlp_forward.1']
    #allocation4 [shape = 'u8[65536]{0}', space=vmem, size = 0x10000, scoped, tag = 'input window, operand 3, single buffered']
    #allocation5 [shape = 's32[1]{0}', space=sflag, size = 0x4, scoped, tag = 'scoped memory for mlp_forward.1']
    #allocation6 [shape = 'u8[32768]{0}', space=vmem, size = 0x8000, scoped, tag = 'input window, operand 5, single buffered']
    %12 = vsyncpa [#allocation3], 0
    %13 = vsyncpa [#allocation5], 0
    // Predicated region
    $region2: #{mlp_forward.1} parent=1 // pred_check
      _
    $region3: #{mlp_forward.1} parent=1 // pred_check_branch
      %15 = sbr.rel (0) target = $region5
    $region4: #{mlp_forward.1} parent=1 // pred_region
      _
    $region5: #{mlp_forward.1} parent=1 // pred_fallthru
      _
    // Predicated region
    $region6: #{mlp_forward.1} parent=1 // pred_check
      _
    $region7: #{mlp_forward.1} parent=1 // pred_check_branch
      %17 = sbr.rel (0) target = $region9
    $region8: #{mlp_forward.1} parent=1 // pred_region
      %s19 = ssub.s32 1024, 1024
      %20 = vsyncadd [#allocation3], %s19
      %s21 = sshll.u32 [#allocation2], 4
      %s22 = int_to_ptr.vmem [resolvable:$true] %s21
      %27 = dma.hbm_to_vmem [thread:$0]  %s1, 1024, %s22, [#allocation3], 64, 64, 4
    $region9: #{mlp_forward.1} parent=1 // pred_fallthru
      _
    // Predicated region
    $region10: #{mlp_forward.1} parent=1 // pred_check
      _
    $region11: #{mlp_forward.1} parent=1 // pred_check_branch
      %29 = sbr.rel (0) target = $region13
    $region12: #{mlp_forward.1} parent=1 // pred_region
      _
    $region13: #{mlp_forward.1} parent=1 // pred_fallthru
      _
    // Predicated region
    $region14: #{mlp_forward.1} parent=1 // pred_check
      _
    $region15: #{mlp_forward.1} parent=1 // pred_check_branch
      %31 = sbr.rel (0) target = $region17
    $region16: #{mlp_forward.1} parent=1 // pred_region
      %s33 = ssub.s32 2048, 2048
      %34 = vsyncadd [#allocation5], %s33
      %s35 = sshll.u32 [#allocation4], 4
      %s36 = int_to_ptr.vmem [resolvable:$true] %s35
      %41 = dma.hbm_to_vmem [thread:$0]  %s3, 2048, %s36, [#allocation5], 64, 64, 4
    $region17: #{mlp_forward.1} parent=1 // pred_fallthru
      _
    // Predicated region
    $region18: #{mlp_forward.1} parent=1 // pred_check
      _
    $region19: #{mlp_forward.1} parent=1 // pred_check_branch
      %43 = sbr.rel (0) target = $region21
    $region20: #{mlp_forward.1} parent=1 // pred_region
      _
    $region21: #{mlp_forward.1} parent=1 // pred_fallthru
      _
    // Predicated region
    $region22: #{mlp_forward.1} parent=1 // pred_check
      _
    $region23: #{mlp_forward.1} parent=1 // pred_check_branch
      %45 = sbr.rel (0) target = $region25
    $region24: #{mlp_forward.1} parent=1 // pred_region
      %s47 = ssub.s32 1024, 1024
      %48 = vsyncadd [#allocation5], %s47
      %s49 = sshll.u32 [#allocation6], 4
      %s50 = int_to_ptr.vmem [resolvable:$true] %s49
      %55 = dma.hbm_to_vmem [thread:$0]  %s5, 1024, %s50, [#allocation5], 64, 64, 4
    $region25: #{mlp_forward.1} parent=1 // pred_fallthru
      _
    // Predicated region
    $region26: #{mlp_forward.1} parent=1 // pred_check
      _
    $region27: #{mlp_forward.1} parent=1 // pred_check_branch
      %57 = sbr.rel (0) target = $region29
    $region28: #{mlp_forward.1} parent=1 // pred_region
      _
    $region29: #{mlp_forward.1} parent=1 // pred_fallthru
      _
    // Predicated region
    $region30: #{mlp_forward.1} parent=1 // pred_check
      _
    $region31: #{mlp_forward.1} parent=1 // pred_check_branch
      %59 = sbr.rel (0) target = $region33
    $region32: #{mlp_forward.1} parent=1 // pred_region
      %60 = dma.done [#allocation3], 1024
    $region33: #{mlp_forward.1} parent=1 // pred_fallthru
      _
    // Predicated region
    $region34: #{mlp_forward.1} parent=1 // pred_check
      _
    $region35: #{mlp_forward.1} parent=1 // pred_check_branch
      %62 = sbr.rel (0) target = $region37
    $region36: #{mlp_forward.1} parent=1 // pred_region
      %63 = dma.done [#allocation5], 2048
    $region37: #{mlp_forward.1} parent=1 // pred_fallthru
      _
    // Predicated region
    $region38: #{mlp_forward.1} parent=1 // pred_check
      _
    $region39: #{mlp_forward.1} parent=1 // pred_check_branch
      %65 = sbr.rel (0) target = $region41
    $region40: #{mlp_forward.1} parent=1 // pred_region
      %66 = dma.done [#allocation5], 1024
    $region41: #{mlp_forward.1} parent=1 // pred_fallthru
      _
    %v68 = vld [vmem:[%s0] sm:$0xf]
    %v69 = vld [vmem:[%s0 + $0x4] sm:$0xf]
    %v70 = vld [vmem:[#allocation2] sm:$0xf]
    %v71 = vld [vmem:[#allocation2 + $0x4] sm:$0xf]
    %v72 = vld [vmem:[#allocation2 + $0x8] sm:$0xf]
    %v73 = vld [vmem:[#allocation2 + $0xc] sm:$0xf]
    %v74 = vld [vmem:[#allocation2 + $0x10] sm:$0xf]
    %v75 = vld [vmem:[#allocation2 + $0x14] sm:$0xf]
    %v76 = vld [vmem:[#allocation2 + $0x18] sm:$0xf]
    %v77 = vld [vmem:[#allocation2 + $0x1c] sm:$0xf]
    %v78 = vld [vmem:[#allocation2 + $0x20] sm:$0xf]
    %v79 = vld [vmem:[#allocation2 + $0x24] sm:$0xf]
    %v80 = vld [vmem:[#allocation2 + $0x28] sm:$0xf]
    %v81 = vld [vmem:[#allocation2 + $0x2c] sm:$0xf]
    %v82 = vld [vmem:[#allocation2 + $0x30] sm:$0xf]
    %v83 = vld [vmem:[#allocation2 + $0x34] sm:$0xf]
    %v84 = vld [vmem:[#allocation2 + $0x38] sm:$0xf]
    %v85 = vld [vmem:[#allocation2 + $0x3c] sm:$0xf]
    %v86 = vld [vmem:[%s2] sm:$0x1]
    %v88 = vlaneseq
    %v89 = vshrl.u32 %v88, 7
    %v90 = vsub.s32 0, %v89
    %v91 = vrot.slane %v86, %v90
    %v95 = vunpack.c.l.b16 %v68
    %v96 = vunpack.c.l.b16 %v69
    %v97 = vpack.c.b16 %v96, %v95
    %v115 = vunpack.c.l.b16 %v70
    %v116 = vunpack.c.l.b16 %v71
    %v117 = vunpack.c.l.b16 %v72
    %v118 = vunpack.c.l.b16 %v73
    %v119 = vunpack.c.l.b16 %v74
    %v120 = vunpack.c.l.b16 %v75
    %v121 = vunpack.c.l.b16 %v76
    %v122 = vunpack.c.l.b16 %v77
    %v123 = vunpack.c.l.b16 %v78
    %v124 = vunpack.c.l.b16 %v79
    %v125 = vunpack.c.l.b16 %v80
    %v126 = vunpack.c.l.b16 %v81
    %v127 = vunpack.c.l.b16 %v82
    %v128 = vunpack.c.l.b16 %v83
    %v129 = vunpack.c.l.b16 %v84
    %v130 = vunpack.c.l.b16 %v85
    %v131 = vpack.c.b16 %v116, %v115
    %v132 = vpack.c.b16 %v118, %v117
    %v133 = vpack.c.b16 %v120, %v119
    %v134 = vpack.c.b16 %v122, %v121
    %v135 = vpack.c.b16 %v124, %v123
    %v136 = vpack.c.b16 %v126, %v125
    %v137 = vpack.c.b16 %v128, %v127
    %v138 = vpack.c.b16 %v130, %v129
    %147 = vmatprep.subr.bf16.mxu0 0
    %148 = vmatpush1.bf16.msra.mxu0 %v131
    %149 = vmatprep.subr.bf16.mxu0 0
    %150 = vmatpush1.bf16.msra.mxu0 %v132
    %151 = vmatprep.subr.bf16.mxu0 0
    %152 = vmatpush1.bf16.msra.mxu0 %v133
    %153 = vmatprep.subr.bf16.mxu0 0
    %154 = vmatpush1.bf16.msra.mxu0 %v134
    %155 = vmatprep.subr.bf16.mxu0 0
    %156 = vmatpush1.bf16.msra.mxu0 %v135
    %157 = vmatprep.subr.bf16.mxu0 0
    %158 = vmatpush1.bf16.msra.mxu0 %v136
    %159 = vmatprep.subr.bf16.mxu0 0
    %160 = vmatpush1.bf16.msra.mxu0 %v137
    %161 = vmatprep.subr.bf16.mxu0 0
    %162 = vmatpush1.bf16.msra.mxu0 %v138
    %163 = vmatprep.subr.bf16.mxu0 0
    %164 = vmatpush1.bf16.msra.mxu0 0
    %165 = vmatprep.subr.bf16.mxu0 0
    %166 = vmatpush1.bf16.msra.mxu0 0
    %167 = vmatprep.subr.bf16.mxu0 0
    %168 = vmatpush1.bf16.msra.mxu0 0
    %169 = vmatprep.subr.bf16.mxu0 0
    %170 = vmatpush1.bf16.msra.mxu0 0
    %171 = vmatprep.subr.bf16.mxu0 0
    %172 = vmatpush1.bf16.msra.mxu0 0
    %173 = vmatprep.subr.bf16.mxu0 0
    %174 = vmatpush1.bf16.msra.mxu0 0
    %175 = vmatprep.subr.bf16.mxu0 0
    %176 = vmatpush1.bf16.msra.mxu0 0
    %177 = vmatprep.subr.bf16.mxu0 0
    %178 = vmatpush1.bf16.msra.mxu0 0
    %179 = vmatprep.mubr.bf16.mxu0 0
    %180 = vmatmul.mubr.bf16.gmra.mrb[0].mxu0 %v97
    %v181 = vpop.f32.mrb[0].mxu0
    %v182 = vadd.f32 %v91, %v181
    %v183 = vpop.f32.mrb[0].mxu0
    %v184 = vpop.f32.mrb[0].mxu0
    %v185 = vadd.f32 %v91, %v184
    %v186 = vpop.f32.mrb[0].mxu0
    %187 = vdwg.mxu0
    %v188 = vmax.f32 %v182, 0.0
    %v189 = vmax.f32 %v185, 0.0
    %v190 = vpack.c.bf16 %v189, %v188
    %v191 = vld [vmem:[#allocation4] sm:$0xf]
    %v192 = vld [vmem:[#allocation4 + $0x4] sm:$0xf]
    %v193 = vld [vmem:[#allocation4 + $0x8] sm:$0xf]
    %v194 = vld [vmem:[#allocation4 + $0xc] sm:$0xf]
    %v195 = vld [vmem:[#allocation4 + $0x10] sm:$0xf]
    %v196 = vld [vmem:[#allocation4 + $0x14] sm:$0xf]
    %v197 = vld [vmem:[#allocation4 + $0x18] sm:$0xf]
    %v198 = vld [vmem:[#allocation4 + $0x1c] sm:$0xf]
    %v199 = vld [vmem:[#allocation4 + $0x20] sm:$0xf]
    %v200 = vld [vmem:[#allocation4 + $0x24] sm:$0xf]
    %v201 = vld [vmem:[#allocation4 + $0x28] sm:$0xf]
    %v202 = vld [vmem:[#allocation4 + $0x2c] sm:$0xf]
    %v203 = vld [vmem:[#allocation4 + $0x30] sm:$0xf]
    %v204 = vld [vmem:[#allocation4 + $0x34] sm:$0xf]
    %v205 = vld [vmem:[#allocation4 + $0x38] sm:$0xf]
    %v206 = vld [vmem:[#allocation4 + $0x3c] sm:$0xf]
    %v207 = vld [vmem:[%s4] sm:$0x1]
    %v209 = vlaneseq
    %v210 = vshrl.u32 %v209, 7
    %v211 = vsub.s32 0, %v210
    %v212 = vrot.slane %v207, %v211
    %v230 = vunpack.c.l.b16 %v191
    %v231 = vunpack.c.l.b16 %v192
    %v232 = vunpack.c.l.b16 %v193
    %v233 = vunpack.c.l.b16 %v194
    %v234 = vunpack.c.l.b16 %v195
    %v235 = vunpack.c.l.b16 %v196
    %v236 = vunpack.c.l.b16 %v197
    %v237 = vunpack.c.l.b16 %v198
    %v238 = vunpack.c.l.b16 %v199
    %v239 = vunpack.c.l.b16 %v200
    %v240 = vunpack.c.l.b16 %v201
    %v241 = vunpack.c.l.b16 %v202
    %v242 = vunpack.c.l.b16 %v203
    %v243 = vunpack.c.l.b16 %v204
    %v244 = vunpack.c.l.b16 %v205
    %v245 = vunpack.c.l.b16 %v206
    %v246 = vpack.c.b16 %v231, %v230
    %v247 = vpack.c.b16 %v233, %v232
    %v248 = vpack.c.b16 %v235, %v234
    %v249 = vpack.c.b16 %v237, %v236
    %v250 = vpack.c.b16 %v239, %v238
    %v251 = vpack.c.b16 %v241, %v240
    %v252 = vpack.c.b16 %v243, %v242
    %v253 = vpack.c.b16 %v245, %v244
    %262 = vmatprep.subr.bf16.mxu0 0
    %263 = vmatpush1.bf16.msra.mxu0 %v246
    %264 = vmatprep.subr.bf16.mxu0 0
    %265 = vmatpush1.bf16.msra.mxu0 %v247
    %266 = vmatprep.subr.bf16.mxu0 0
    %267 = vmatpush1.bf16.msra.mxu0 %v248
    %268 = vmatprep.subr.bf16.mxu0 0
    %269 = vmatpush1.bf16.msra.mxu0 %v249
    %270 = vmatprep.subr.bf16.mxu0 0
    %271 = vmatpush1.bf16.msra.mxu0 %v250
    %272 = vmatprep.subr.bf16.mxu0 0
    %273 = vmatpush1.bf16.msra.mxu0 %v251
    %274 = vmatprep.subr.bf16.mxu0 0
    %275 = vmatpush1.bf16.msra.mxu0 %v252
    %276 = vmatprep.subr.bf16.mxu0 0
    %277 = vmatpush1.bf16.msra.mxu0 %v253
    %278 = vmatprep.subr.bf16.mxu0 0
    %279 = vmatpush1.bf16.msra.mxu0 0
    %280 = vmatprep.subr.bf16.mxu0 0
    %281 = vmatpush1.bf16.msra.mxu0 0
    %282 = vmatprep.subr.bf16.mxu0 0
    %283 = vmatpush1.bf16.msra.mxu0 0
    %284 = vmatprep.subr.bf16.mxu0 0
    %285 = vmatpush1.bf16.msra.mxu0 0
    %286 = vmatprep.subr.bf16.mxu0 0
    %287 = vmatpush1.bf16.msra.mxu0 0
    %288 = vmatprep.subr.bf16.mxu0 0
    %289 = vmatpush1.bf16.msra.mxu0 0
    %290 = vmatprep.subr.bf16.mxu0 0
    %291 = vmatpush1.bf16.msra.mxu0 0
    %292 = vmatprep.subr.bf16.mxu0 0
    %293 = vmatpush1.bf16.msra.mxu0 0
    %294 = vmatprep.mubr.bf16.mxu0 0
    %295 = vmatmul.mubr.bf16.gmra.mrb[0].mxu0 %v190
    %v296 = vpop.f32.mrb[0].mxu0
    %v297 = vadd.f32 %v212, %v296
    %v298 = vpop.f32.mrb[0].mxu0
    %v299 = vpop.f32.mrb[0].mxu0
    %v300 = vadd.f32 %v212, %v299
    %v301 = vpop.f32.mrb[0].mxu0
    %302 = vdwg.mxu0
    %v303 = vmax.f32 %v297, 0.0
    %v304 = vmax.f32 %v300, 0.0
    %v305 = vpack.c.bf16 %v304, %v303
    %s306 = scalar_lea.vmem [#allocation4], 64
    %v307 = vld [vmem:[%s306] sm:$0xf]
    %v308 = vld [vmem:[%s306 + $0x4] sm:$0xf]
    %v309 = vld [vmem:[%s306 + $0x8] sm:$0xf]
    %v310 = vld [vmem:[%s306 + $0xc] sm:$0xf]
    %v311 = vld [vmem:[%s306 + $0x10] sm:$0xf]
    %v312 = vld [vmem:[%s306 + $0x14] sm:$0xf]
    %v313 = vld [vmem:[%s306 + $0x18] sm:$0xf]
    %v314 = vld [vmem:[%s306 + $0x1c] sm:$0xf]
    %v315 = vld [vmem:[%s306 + $0x20] sm:$0xf]
    %v316 = vld [vmem:[%s306 + $0x24] sm:$0xf]
    %v317 = vld [vmem:[%s306 + $0x28] sm:$0xf]
    %v318 = vld [vmem:[%s306 + $0x2c] sm:$0xf]
    %v319 = vld [vmem:[%s306 + $0x30] sm:$0xf]
    %v320 = vld [vmem:[%s306 + $0x34] sm:$0xf]
    %v321 = vld [vmem:[%s306 + $0x38] sm:$0xf]
    %v322 = vld [vmem:[%s306 + $0x3c] sm:$0xf]
    %s323 = scalar_lea.vmem %s4, 1
    %v324 = vld [vmem:[%s323] sm:$0x1]
    %v326 = vlaneseq
    %v327 = vshrl.u32 %v326, 7
    %v328 = vsub.s32 0, %v327
    %v329 = vrot.slane %v324, %v328
    %v347 = vunpack.c.l.b16 %v307
    %v348 = vunpack.c.l.b16 %v308
    %v349 = vunpack.c.l.b16 %v309
    %v350 = vunpack.c.l.b16 %v310
    %v351 = vunpack.c.l.b16 %v311
    %v352 = vunpack.c.l.b16 %v312
    %v353 = vunpack.c.l.b16 %v313
    %v354 = vunpack.c.l.b16 %v314
    %v355 = vunpack.c.l.b16 %v315
    %v356 = vunpack.c.l.b16 %v316
    %v357 = vunpack.c.l.b16 %v317
    %v358 = vunpack.c.l.b16 %v318
    %v359 = vunpack.c.l.b16 %v319
    %v360 = vunpack.c.l.b16 %v320
    %v361 = vunpack.c.l.b16 %v321
    %v362 = vunpack.c.l.b16 %v322
    %v363 = vpack.c.b16 %v348, %v347
    %v364 = vpack.c.b16 %v350, %v349
    %v365 = vpack.c.b16 %v352, %v351
    %v366 = vpack.c.b16 %v354, %v353
    %v367 = vpack.c.b16 %v356, %v355
    %v368 = vpack.c.b16 %v358, %v357
    %v369 = vpack.c.b16 %v360, %v359
    %v370 = vpack.c.b16 %v362, %v361
    %379 = vmatprep.subr.bf16.mxu0 0
    %380 = vmatpush1.bf16.msra.mxu0 %v363
    %381 = vmatprep.subr.bf16.mxu0 0
    %382 = vmatpush1.bf16.msra.mxu0 %v364
    %383 = vmatprep.subr.bf16.mxu0 0
    %384 = vmatpush1.bf16.msra.mxu0 %v365
    %385 = vmatprep.subr.bf16.mxu0 0
    %386 = vmatpush1.bf16.msra.mxu0 %v366
    %387 = vmatprep.subr.bf16.mxu0 0
    %388 = vmatpush1.bf16.msra.mxu0 %v367
    %389 = vmatprep.subr.bf16.mxu0 0
    %390 = vmatpush1.bf16.msra.mxu0 %v368
    %391 = vmatprep.subr.bf16.mxu0 0
    %392 = vmatpush1.bf16.msra.mxu0 %v369
    %393 = vmatprep.subr.bf16.mxu0 0
    %394 = vmatpush1.bf16.msra.mxu0 %v370
    %395 = vmatprep.subr.bf16.mxu0 0
    %396 = vmatpush1.bf16.msra.mxu0 0
    %397 = vmatprep.subr.bf16.mxu0 0
    %398 = vmatpush1.bf16.msra.mxu0 0
    %399 = vmatprep.subr.bf16.mxu0 0
    %400 = vmatpush1.bf16.msra.mxu0 0
    %401 = vmatprep.subr.bf16.mxu0 0
    %402 = vmatpush1.bf16.msra.mxu0 0
    %403 = vmatprep.subr.bf16.mxu0 0
    %404 = vmatpush1.bf16.msra.mxu0 0
    %405 = vmatprep.subr.bf16.mxu0 0
    %406 = vmatpush1.bf16.msra.mxu0 0
    %407 = vmatprep.subr.bf16.mxu0 0
    %408 = vmatpush1.bf16.msra.mxu0 0
    %409 = vmatprep.subr.bf16.mxu0 0
    %410 = vmatpush1.bf16.msra.mxu0 0
    %411 = vmatprep.mubr.bf16.mxu0 0
    %412 = vmatmul.mubr.bf16.gmra.mrb[0].mxu0 %v305
    %v413 = vpop.f32.mrb[0].mxu0
    %v414 = vadd.f32 %v329, %v413
    %v415 = vpop.f32.mrb[0].mxu0
    %v416 = vpop.f32.mrb[0].mxu0
    %v417 = vadd.f32 %v329, %v416
    %v418 = vpop.f32.mrb[0].mxu0
    %419 = vdwg.mxu0
    %v420 = vmax.f32 %v414, 0.0
    %v421 = vmax.f32 %v417, 0.0
    %v422 = vpack.c.bf16 %v421, %v420
    %v423 = vld [vmem:[#allocation6] sm:$0xf]
    %v424 = vld [vmem:[#allocation6 + $0x4] sm:$0xf]
    %v425 = vld [vmem:[#allocation6 + $0x8] sm:$0xf]
    %v426 = vld [vmem:[#allocation6 + $0xc] sm:$0xf]
    %v427 = vld [vmem:[#allocation6 + $0x10] sm:$0xf]
    %v428 = vld [vmem:[#allocation6 + $0x14] sm:$0xf]
    %v429 = vld [vmem:[#allocation6 + $0x18] sm:$0xf]
    %v430 = vld [vmem:[#allocation6 + $0x1c] sm:$0xf]
    %v431 = vld [vmem:[#allocation6 + $0x20] sm:$0xf]
    %v432 = vld [vmem:[#allocation6 + $0x24] sm:$0xf]
    %v433 = vld [vmem:[#allocation6 + $0x28] sm:$0xf]
    %v434 = vld [vmem:[#allocation6 + $0x2c] sm:$0xf]
    %v435 = vld [vmem:[#allocation6 + $0x30] sm:$0xf]
    %v436 = vld [vmem:[#allocation6 + $0x34] sm:$0xf]
    %v437 = vld [vmem:[#allocation6 + $0x38] sm:$0xf]
    %v438 = vld [vmem:[#allocation6 + $0x3c] sm:$0xf]
    %v439 = vld [vmem:[%s6] sm:$0x1]
    %v441 = vlaneseq
    %v442 = vshrl.u32 %v441, 7
    %v443 = vsub.s32 0, %v442
    %v444 = vrot.slane %v439, %v443
    %v462 = vunpack.c.l.b16 %v423
    %v463 = vunpack.c.l.b16 %v424
    %v464 = vunpack.c.l.b16 %v425
    %v465 = vunpack.c.l.b16 %v426
    %v466 = vunpack.c.l.b16 %v427
    %v467 = vunpack.c.l.b16 %v428
    %v468 = vunpack.c.l.b16 %v429
    %v469 = vunpack.c.l.b16 %v430
    %v470 = vunpack.c.l.b16 %v431
    %v471 = vunpack.c.l.b16 %v432
    %v472 = vunpack.c.l.b16 %v433
    %v473 = vunpack.c.l.b16 %v434
    %v474 = vunpack.c.l.b16 %v435
    %v475 = vunpack.c.l.b16 %v436
    %v476 = vunpack.c.l.b16 %v437
    %v477 = vunpack.c.l.b16 %v438
    %v478 = vpack.c.b16 %v463, %v462
    %v479 = vpack.c.b16 %v465, %v464
    %v480 = vpack.c.b16 %v467, %v466
    %v481 = vpack.c.b16 %v469, %v468
    %v482 = vpack.c.b16 %v471, %v470
    %v483 = vpack.c.b16 %v473, %v472
    %v484 = vpack.c.b16 %v475, %v474
    %v485 = vpack.c.b16 %v477, %v476
    %494 = vmatprep.subr.bf16.mxu0 0
    %495 = vmatpush1.bf16.msra.mxu0 %v478
    %496 = vmatprep.subr.bf16.mxu0 0
    %497 = vmatpush1.bf16.msra.mxu0 %v479
    %498 = vmatprep.subr.bf16.mxu0 0
    %499 = vmatpush1.bf16.msra.mxu0 %v480
    %500 = vmatprep.subr.bf16.mxu0 0
    %501 = vmatpush1.bf16.msra.mxu0 %v481
    %502 = vmatprep.subr.bf16.mxu0 0
    %503 = vmatpush1.bf16.msra.mxu0 %v482
    %504 = vmatprep.subr.bf16.mxu0 0
    %505 = vmatpush1.bf16.msra.mxu0 %v483
    %506 = vmatprep.subr.bf16.mxu0 0
    %507 = vmatpush1.bf16.msra.mxu0 %v484
    %508 = vmatprep.subr.bf16.mxu0 0
    %509 = vmatpush1.bf16.msra.mxu0 %v485
    %510 = vmatprep.subr.bf16.mxu0 0
    %511 = vmatpush1.bf16.msra.mxu0 0
    %512 = vmatprep.subr.bf16.mxu0 0
    %513 = vmatpush1.bf16.msra.mxu0 0
    %514 = vmatprep.subr.bf16.mxu0 0
    %515 = vmatpush1.bf16.msra.mxu0 0
    %516 = vmatprep.subr.bf16.mxu0 0
    %517 = vmatpush1.bf16.msra.mxu0 0
    %518 = vmatprep.subr.bf16.mxu0 0
    %519 = vmatpush1.bf16.msra.mxu0 0
    %520 = vmatprep.subr.bf16.mxu0 0
    %521 = vmatpush1.bf16.msra.mxu0 0
    %522 = vmatprep.subr.bf16.mxu0 0
    %523 = vmatpush1.bf16.msra.mxu0 0
    %524 = vmatprep.subr.bf16.mxu0 0
    %525 = vmatpush1.bf16.msra.mxu0 0
    %526 = vmatprep.mubr.bf16.mxu0 0
    %527 = vmatmul.mubr.bf16.gmra.mrb[0].mxu0 %v422
    %v528 = vpop.f32.mrb[0].mxu0
    %v529 = vadd.f32 %v444, %v528
    %v530 = vpop.f32.mrb[0].mxu0
    %v531 = vpop.f32.mrb[0].mxu0
    %v532 = vadd.f32 %v444, %v531
    %v533 = vpop.f32.mrb[0].mxu0
    %534 = vdwg.mxu0
    %535 = vst [vmem:[%s7] sm:$0xff] %v529
    %536 = vst [vmem:[%s7 + $0x8] sm:$0xff] %v532
    // Predicated region
    $region42: #{mlp_forward.1} parent=1 // pred_check
      _
    $region43: #{mlp_forward.1} parent=1 // pred_check_branch
      %538 = sbr.rel (0) target = $region45
    $region44: #{mlp_forward.1} parent=1 // pred_region
      _
    $region45: #{mlp_forward.1} parent=1 // pred_fallthru
      _
    // Predicated region
    $region46: #{mlp_forward.1} parent=1 // pred_check
      _
    $region47: #{mlp_forward.1} parent=1 // pred_check_branch
      %540 = sbr.rel (0) target = $region49
    $region48: #{mlp_forward.1} parent=1 // pred_region
      _
    $region49: #{mlp_forward.1} parent=1 // pred_fallthru
      _
    %541 = vsyncpa [#allocation3], 1
    %542 = vsyncpa [#allocation5], 1

</llo_original>
